<compile_context>
chip_gen: v7x
topology: tpu7x:2x2x1
jax: 0.10.0
libtpu: 0.0.40
codegen_flags: <defaults>
</compile_context>

<pallas_src>
import functools

import jax
import jax.numpy as jnp
from jax.experimental import pallas as pl
from jax.experimental.pallas import tpu as pltpu


def _round_up(x, m):
    return (x + m - 1) // m * m


def ae_encoder_kernel(x_ref, w1_ref, w2_ref, w3_ref, bias_ref, o_ref, *,
                      d1, d2, d3):
    # x arrives in native f32; cast to bf16 on the VPU right before the MXU.
    x = x_ref[...].astype(jnp.bfloat16)                      # (TM, d0) bf16

    # Packed biases, kept as 2D (1, dk) slices in natural (sublane, lane) form.
    b1 = bias_ref[0:1, :d1]                                  # (1, d1) f32
    b2 = bias_ref[1:2, :d2]                                  # (1, d2) f32
    b3 = bias_ref[2:3, :d3]                                  # (1, d3) f32

    # layer 1: Linear(d0 -> d1) + ReLU   (bf16 MXU operands, f32 accum/epilogue)
    h1 = jnp.dot(x, w1_ref[...], preferred_element_type=jnp.float32)
    h1 = jnp.maximum(h1 + b1, 0.0)
    # layer 2: Linear(d1 -> d2) + ReLU
    h2 = jnp.dot(h1.astype(jnp.bfloat16), w2_ref[...],
                 preferred_element_type=jnp.float32)
    h2 = jnp.maximum(h2 + b2, 0.0)
    # output layer: Linear(d2 -> d3) + ReLU  -> "code"
    h3 = jnp.dot(h2.astype(jnp.bfloat16), w3_ref[...],
                 preferred_element_type=jnp.float32)
    o_ref[...] = jnp.maximum(h3 + b3, 0.0).astype(o_ref.dtype)


def ae_encoder(features, params, *, tm=2048):
    """features: [B, d0] float32 (cast to bf16 happens inside the kernel)."""
    w1, w2, w3 = params["w1"], params["w2"], params["w3"]
    bias = params["bias"]                          # (3, d1) f32, zero padded
    d0, d1 = w1.shape
    d2 = w2.shape[1]
    d3 = w3.shape[1]

    B = features.shape[0]

    # Batch tile: multiple of 8 (sublane constraint). Cap so that there are
    # ~>=4 grid steps when B allows it: amortizes per-step overhead, keeps the
    # double-buffered x DMA ahead of compute, and guarantees v7x's 2 TCs both
    # get work under dimension_semantics=("parallel",).
    tm = max(8, _round_up(min(tm, 4096), 8))
    tm = min(tm, max(8, _round_up(pl.cdiv(B, 4), 8)))
    n_steps = pl.cdiv(B, tm)   # partial last block: reads past B are garbage
                               # rows (row-independent math), stores are clipped.

    kernel = functools.partial(ae_encoder_kernel, d1=d1, d2=d2, d3=d3)

    flops = 2 * B * (d0 * d1 + d1 * d2 + d2 * d3)
    bytes_accessed = (B * d0 * 4 + B * d3 * 4                 # x in, code out (f32)
                      + 2 * (d0 * d1 + d1 * d2 + d2 * d3)     # bf16 weights
                      + 3 * d1 * 4)                           # packed biases

    return pl.pallas_call(
        kernel,
        out_shape=jax.ShapeDtypeStruct((B, d3), jnp.float32),
        grid=(n_steps,),
        in_specs=[
            pl.BlockSpec((tm, d0), lambda i: (i, 0)),    # x: tiled over batch
            pl.BlockSpec((d0, d1), lambda i: (0, 0)),    # w1: VMEM-resident
            pl.BlockSpec((d1, d2), lambda i: (0, 0)),    # w2: VMEM-resident
            pl.BlockSpec((d2, d3), lambda i: (0, 0)),    # w3: VMEM-resident
            pl.BlockSpec((3, d1), lambda i: (0, 0)),     # packed biases
        ],
        out_specs=pl.BlockSpec((tm, d3), lambda i: (i, 0)),
        compiler_params=pltpu.CompilerParams(
            dimension_semantics=("parallel",)),          # 2-TC sharding on v7x
        cost_estimate=pl.CostEstimate(flops=flops, transcendentals=0,
                                      bytes_accessed=bytes_accessed),
    )(features.astype(jnp.float32), w1, w2, w3, bias)


def init_params(key, input_shape):
    """nn.Linear-style init (U[-1/sqrt(in), 1/sqrt(in)]).
    Weights stored (in_features, out_features) in bf16; biases packed into one
    zero-padded (3, d1) f32 array (single DMA instead of three tiny ones)."""
    d0 = input_shape
    d1 = int(input_shape * (2 / 3))
    d2 = int(input_shape * (1 / 3))
    d3 = int(input_shape * (1 / 6))

    def linear(k, din, dout):
        kw, kb = jax.random.split(k)
        bound = 1.0 / (din ** 0.5)
        w = jax.random.uniform(kw, (din, dout), jnp.float32, -bound, bound)
        b = jax.random.uniform(kb, (dout,), jnp.float32, -bound, bound)
        return w.astype(jnp.bfloat16), b

    k1, k2, k3 = jax.random.split(key, 3)
    w1, b1 = linear(k1, d0, d1)
    w2, b2 = linear(k2, d1, d2)
    w3, b3 = linear(k3, d2, d3)

    bias = jnp.zeros((3, d1), jnp.float32)
    bias = bias.at[0, :d1].set(b1).at[1, :d2].set(b2).at[2, :d3].set(b3)
    return {"w1": w1, "w2": w2, "w3": w3, "bias": bias}


def ae_encoder_ref(features, params):
    """Pure-JAX reference of the same (bf16-MXU-operand, f32-accum) math."""
    w1, w2, w3 = params["w1"], params["w2"], params["w3"]
    bias = params["bias"]
    d1, d2, d3 = w1.shape[1], w2.shape[1], w3.shape[1]
    b1, b2, b3 = bias[0, :d1], bias[1, :d2], bias[2, :d3]
    x = features.astype(jnp.bfloat16)
    h1 = jnp.maximum(
        jnp.dot(x, w1, preferred_element_type=jnp.float32) + b1, 0.0)
    h2 = jnp.maximum(
        jnp.dot(h1.astype(jnp.bfloat16), w2,
                preferred_element_type=jnp.float32) + b2, 0.0)
    h3 = jnp.maximum(
        jnp.dot(h2.astype(jnp.bfloat16), w3,
                preferred_element_type=jnp.float32) + b3, 0.0)
    return h3


if __name__ == "__main__":
    key = jax.random.PRNGKey(0)
    k_params, k_x = jax.random.split(key)

    INPUT_SHAPE = 96   # -> hidden 64, 32, code 16
    BATCH = 200        # not a multiple of the tile: exercises the partial
                       # last block (no jnp.pad / out[:B]) and >=4 grid steps.

    params = init_params(k_params, INPUT_SHAPE)
    x = jax.random.normal(k_x, (BATCH, INPUT_SHAPE), jnp.float32)

    code = jax.block_until_ready(ae_encoder(x, params))
    ref = jax.block_until_ready(ae_encoder_ref(x, params))

    assert code.shape == (BATCH, int(INPUT_SHAPE * (1 / 6)))
    assert code.dtype == jnp.float32
    assert jnp.allclose(code, ref, atol=1e-2, rtol=1e-2)

    print("KERNEL_OK")
</pallas_src>

<mosaic_0001>
module attributes {stable_mosaic.version = 11 : i64} {
  func.func @ae_encoder_kernel(%arg0: i32, %arg1: memref<56x96xf32, #tpu.memory_space<vmem>>, %arg2: memref<96x64xbf16, #tpu.memory_space<vmem>>, %arg3: memref<64x32xbf16, #tpu.memory_space<vmem>>, %arg4: memref<32x16xbf16, #tpu.memory_space<vmem>>, %arg5: memref<3x64xf32, #tpu.memory_space<vmem>>, %arg6: memref<56x16xf32, #tpu.memory_space<vmem>>) attributes {dimension_semantics = [#tpu.dimension_semantics<parallel>], iteration_bounds = array<i64: 4>, scalar_prefetch = 0 : i64, scratch_operands = 0 : i64, tpu.core_type = #tpu.core_type<tc>, window_params = [{transform_indices = @transform_0, window_bounds = array<i64: 56, 96>}, {pipeline_mode = #tpu.pipeline_mode<synchronous>, transform_indices = @transform_1, window_bounds = array<i64: 96, 64>}, {pipeline_mode = #tpu.pipeline_mode<synchronous>, transform_indices = @transform_2, window_bounds = array<i64: 64, 32>}, {pipeline_mode = #tpu.pipeline_mode<synchronous>, transform_indices = @transform_3, window_bounds = array<i64: 32, 16>}, {pipeline_mode = #tpu.pipeline_mode<synchronous>, transform_indices = @transform_4, window_bounds = array<i64: 3, 64>}, {transform_indices = @transform_5, window_bounds = array<i64: 56, 16>}]} {
    %c0 = arith.constant 0 : index
    %c0_0 = arith.constant 0 : index
    %0 = vector.load %arg1[%c0, %c0_0] : memref<56x96xf32, #tpu.memory_space<vmem>>, vector<56x96xf32>
    %1 = arith.truncf %0 : vector<56x96xf32> to vector<56x96xbf16>
    %c0_1 = arith.constant 0 : index
    %c0_2 = arith.constant 0 : index
    %2 = vector.load %arg5[%c0_1, %c0_2] : memref<3x64xf32, #tpu.memory_space<vmem>>, vector<1x64xf32>
    %c1 = arith.constant 1 : index
    %c0_3 = arith.constant 0 : index
    %3 = vector.load %arg5[%c1, %c0_3] : memref<3x64xf32, #tpu.memory_space<vmem>>, vector<1x32xf32>
    %c2 = arith.constant 2 : index
    %c0_4 = arith.constant 0 : index
    %4 = vector.load %arg5[%c2, %c0_4] : memref<3x64xf32, #tpu.memory_space<vmem>>, vector<1x16xf32>
    %c0_5 = arith.constant 0 : index
    %c0_6 = arith.constant 0 : index
    %5 = vector.load %arg2[%c0_5, %c0_6] : memref<96x64xbf16, #tpu.memory_space<vmem>>, vector<96x64xbf16>
    %cst = arith.constant dense<0.000000e+00> : vector<56x64xf32>
    %6 = tpu.matmul %1, %5, %cst {dimension_numbers = #tpu.dot_dimension_numbers<[1], [0], [0], [1], [0, 0, 1, 1], [], []>} : vector<56x96xbf16>, vector<96x64xbf16>, vector<56x64xf32> -> vector<56x64xf32>
    %7 = vector.broadcast %2 : vector<1x64xf32> to vector<56x64xf32>
    %8 = arith.addf %6, %7 : vector<56x64xf32>
    %cst_7 = arith.constant 0.000000e+00 : f32
    %9 = vector.broadcast %cst_7 : f32 to vector<56x64xf32>
    %10 = arith.maximumf %8, %9 : vector<56x64xf32>
    %11 = arith.truncf %10 : vector<56x64xf32> to vector<56x64xbf16>
    %c0_8 = arith.constant 0 : index
    %c0_9 = arith.constant 0 : index
    %12 = vector.load %arg3[%c0_8, %c0_9] : memref<64x32xbf16, #tpu.memory_space<vmem>>, vector<64x32xbf16>
    %cst_10 = arith.constant dense<0.000000e+00> : vector<56x32xf32>
    %13 = tpu.matmul %11, %12, %cst_10 {dimension_numbers = #tpu.dot_dimension_numbers<[1], [0], [0], [1], [0, 0, 1, 1], [], []>} : vector<56x64xbf16>, vector<64x32xbf16>, vector<56x32xf32> -> vector<56x32xf32>
    %14 = vector.broadcast %3 : vector<1x32xf32> to vector<56x32xf32>
    %15 = arith.addf %13, %14 : vector<56x32xf32>
    %cst_11 = arith.constant 0.000000e+00 : f32
    %16 = vector.broadcast %cst_11 : f32 to vector<56x32xf32>
    %17 = arith.maximumf %15, %16 : vector<56x32xf32>
    %18 = arith.truncf %17 : vector<56x32xf32> to vector<56x32xbf16>
    %c0_12 = arith.constant 0 : index
    %c0_13 = arith.constant 0 : index
    %19 = vector.load %arg4[%c0_12, %c0_13] : memref<32x16xbf16, #tpu.memory_space<vmem>>, vector<32x16xbf16>
    %cst_14 = arith.constant dense<0.000000e+00> : vector<56x16xf32>
    %20 = tpu.matmul %18, %19, %cst_14 {dimension_numbers = #tpu.dot_dimension_numbers<[1], [0], [0], [1], [0, 0, 1, 1], [], []>} : vector<56x32xbf16>, vector<32x16xbf16>, vector<56x16xf32> -> vector<56x16xf32>
    %21 = vector.broadcast %4 : vector<1x16xf32> to vector<56x16xf32>
    %22 = arith.addf %20, %21 : vector<56x16xf32>
    %cst_15 = arith.constant 0.000000e+00 : f32
    %23 = vector.broadcast %cst_15 : f32 to vector<56x16xf32>
    %24 = arith.maximumf %22, %23 : vector<56x16xf32>
    %c0_16 = arith.constant 0 : index
    %c0_17 = arith.constant 0 : index
    %25 = vector.load %arg6[%c0_16, %c0_17] : memref<56x16xf32, #tpu.memory_space<vmem>>, vector<56x16xf32>
    tpu.vector_store %arg6[%c0_16, %c0_17], %24 {strides = array<i32>} : memref<56x16xf32, #tpu.memory_space<vmem>>, vector<56x16xf32>,
    return
  }
  func.func @transform_0(%arg0: i32) -> (i32, i32) {
    %c0_i32 = arith.constant 0 : i32
    %c0_i32_0 = arith.constant 0 : i32
    return %arg0, %c0_i32 : i32, i32
  }
  func.func @transform_1(%arg0: i32) -> (i32, i32) {
    %c0_i32 = arith.constant 0 : i32
    %c0_i32_0 = arith.constant 0 : i32
    %c0_i32_1 = arith.constant 0 : i32
    return %c0_i32, %c0_i32_0 : i32, i32
  }
  func.func @transform_2(%arg0: i32) -> (i32, i32) {
    %c0_i32 = arith.constant 0 : i32
    %c0_i32_0 = arith.constant 0 : i32
    %c0_i32_1 = arith.constant 0 : i32
    return %c0_i32, %c0_i32_0 : i32, i32
  }
  func.func @transform_3(%arg0: i32) -> (i32, i32) {
    %c0_i32 = arith.constant 0 : i32
    %c0_i32_0 = arith.constant 0 : i32
    %c0_i32_1 = arith.constant 0 : i32
    return %c0_i32, %c0_i32_0 : i32, i32
  }
  func.func @transform_4(%arg0: i32) -> (i32, i32) {
    %c0_i32 = arith.constant 0 : i32
    %c0_i32_0 = arith.constant 0 : i32
    %c0_i32_1 = arith.constant 0 : i32
    return %c0_i32, %c0_i32_0 : i32, i32
  }
  func.func @transform_5(%arg0: i32) -> (i32, i32) {
    %c0_i32 = arith.constant 0 : i32
    %c0_i32_0 = arith.constant 0 : i32
    return %arg0, %c0_i32 : i32, i32
  }
}

</mosaic_0001>

<llo_original>
// kernel: tpu_custom_call.1
$region0: #{tpu_custom_call.1}
  #allocation0 [shape = 'u32[]', space=smem, size = 0x4, offset = 0x4, fixed_abs, tag = 'smem constant byte address 0x4 - core index']
  #allocation1 [shape = 'u32[144,128]{1,0:T(1,128)}', space=vmem, size = 0x12000, scoped, tag = 'internal scratch']
  %s0 = inlined_call_operand.vmem [shape: f32[200,96], index: 0, kind: input, shape index: {}]
  %s1 = inlined_call_operand.vmem [shape: bf16[96,64], index: 1, kind: input, shape index: {}]
  %s2 = inlined_call_operand.vmem [shape: bf16[64,32], index: 2, kind: input, shape index: {}]
  %s3 = inlined_call_operand.vmem [shape: bf16[32,16], index: 3, kind: input, shape index: {}]
  %s4 = inlined_call_operand.vmem [shape: f32[3,64], index: 4, kind: input, shape index: {}]
  %s5 = inlined_call_operand.vmem [shape: f32[200,16], index: 5, kind: output, shape index: {}]
  %s6 = sld [smem:[#allocation0]]
  $region101: #{tpu_custom_call.1} parent=0
    _
  %s8 = ssub.s32 1, %s6
  %s9 = scalar_select 0, %s8, %s6
  $region1: #{tpu_custom_call.1} parent=0
    #allocation2 [shape = 'u8[57344]{0}', space=vmem, size = 0xe000, scoped, tag = 'output window, operand 0']
    loop: start=0, step=1, limit=6
    $region2: #{tpu_custom_call.1} parent=1 // loop_pre_header
      _
    $region3: #{tpu_custom_call.1} parent=1 // loop_header
      %s11 = sphi 0, %s15
      %p12 = scmp.ge.s32.totalorder %s11, 6
      %s21 = sphi 0, %s23
      %s24 = sphi 0, %s21
      %s25 = sphi 0, %s24
      %s41 = sphi 0, %s25
      %s45 = sphi 0, %s45
      %s47 = sphi 0, %s45
      %s48 = sphi 0, %s47
      %s62 = sphi 0, %s48
      %s66 = sphi 0, %s66
      %s68 = sphi 0, %s66
      %s69 = sphi 0, %s68
      %s83 = sphi 0, %s69
      %s87 = sphi 0, %s87
      %s89 = sphi 0, %s87
      %s90 = sphi 0, %s89
      %s104 = sphi 0, %s90
      %s108 = sphi 0, %s108
      %s110 = sphi 0, %s108
      %s111 = sphi 0, %s110
      %s125 = sphi 0, %s111
      %s131 = sphi 0, %s133
      %s134 = sphi 0, %s131
      %s135 = sphi 0, %s134
      %s151 = sphi 0, %s135
    $region4: #{tpu_custom_call.1} parent=1 // loop_header_branch
      %14 = sbr.rel (%p12) target = $region8
    $region5: #{tpu_custom_call.1} parent=1 // loop_body
      %s16 = ssub.s32 %s11, 1
      %s17 = ssub.s32 %s11, 2
      %s18 = sadd.s32 %s11, 1
      %s19 = ssub.s32 %s11, %s18
      %p20 = scmp.eq.s32.totalorder %s19, 0
      %s22 = sadd.s32 %s21, 1
      %s23 = scalar_select %p20, %s21, %s22
      %p26 = pneg %p20
      %p27 = scmp.eq.s32.totalorder %s11, 3
      %p28 = por %p26, %p27
      %p29 = scmp.ne.s32.totalorder %s21, %s24
      %p30 = scmp.eq.s32.totalorder %s11, 0
      %p31 = por %p29, %p30
      %p32 = scmp.ne.s32.totalorder %s21, %s24
      %p33 = scmp.eq.s32.totalorder %s16, 3
      %p34 = por %p32, %p33
      %p35 = scmp.ne.s32.totalorder %s24, %s25
      %p36 = scmp.eq.s32.totalorder %s16, 0
      %p37 = por %p35, %p36
      %p38 = scmp.ne.s32.totalorder %s24, %s25
      %p39 = scmp.eq.s32.totalorder %s17, 3
      %p40 = por %p38, %p39
      %p42 = scmp.ne.s32.totalorder %s25, %s41
      %p43 = scmp.eq.s32.totalorder %s17, 0
      %p44 = por %p42, %p43
      %s46 = sadd.s32 %s45, 1
      %p49 = scmp.eq.s32.totalorder %s11, 3
      %p50 = scmp.ne.s32.totalorder %s45, %s47
      %p51 = scmp.eq.s32.totalorder %s11, 0
      %p52 = por %p50, %p51
      %p53 = scmp.ne.s32.totalorder %s45, %s47
      %p54 = scmp.eq.s32.totalorder %s16, 3
      %p55 = por %p53, %p54
      %p56 = scmp.ne.s32.totalorder %s47, %s48
      %p57 = scmp.eq.s32.totalorder %s16, 0
      %p58 = por %p56, %p57
      %p59 = scmp.ne.s32.totalorder %s47, %s48
      %p60 = scmp.eq.s32.totalorder %s17, 3
      %p61 = por %p59, %p60
      %p63 = scmp.ne.s32.totalorder %s48, %s62
      %p64 = scmp.eq.s32.totalorder %s17, 0
      %p65 = por %p63, %p64
      %s67 = sadd.s32 %s66, 1
      %p70 = scmp.eq.s32.totalorder %s11, 3
      %p71 = scmp.ne.s32.totalorder %s66, %s68
      %p72 = scmp.eq.s32.totalorder %s11, 0
      %p73 = por %p71, %p72
      %p74 = scmp.ne.s32.totalorder %s66, %s68
      %p75 = scmp.eq.s32.totalorder %s16, 3
      %p76 = por %p74, %p75
      %p77 = scmp.ne.s32.totalorder %s68, %s69
      %p78 = scmp.eq.s32.totalorder %s16, 0
      %p79 = por %p77, %p78
      %p80 = scmp.ne.s32.totalorder %s68, %s69
      %p81 = scmp.eq.s32.totalorder %s17, 3
      %p82 = por %p80, %p81
      %p84 = scmp.ne.s32.totalorder %s69, %s83
      %p85 = scmp.eq.s32.totalorder %s17, 0
      %p86 = por %p84, %p85
      %s88 = sadd.s32 %s87, 1
      %p91 = scmp.eq.s32.totalorder %s11, 3
      %p92 = scmp.ne.s32.totalorder %s87, %s89
      %p93 = scmp.eq.s32.totalorder %s11, 0
      %p94 = por %p92, %p93
      %p95 = scmp.ne.s32.totalorder %s87, %s89
      %p96 = scmp.eq.s32.totalorder %s16, 3
      %p97 = por %p95, %p96
      %p98 = scmp.ne.s32.totalorder %s89, %s90
      %p99 = scmp.eq.s32.totalorder %s16, 0
      %p100 = por %p98, %p99
      %p101 = scmp.ne.s32.totalorder %s89, %s90
      %p102 = scmp.eq.s32.totalorder %s17, 3
      %p103 = por %p101, %p102
      %p105 = scmp.ne.s32.totalorder %s90, %s104
      %p106 = scmp.eq.s32.totalorder %s17, 0
      %p107 = por %p105, %p106
      %s109 = sadd.s32 %s108, 1
      %p112 = scmp.eq.s32.totalorder %s11, 3
      %p113 = scmp.ne.s32.totalorder %s108, %s110
      %p114 = scmp.eq.s32.totalorder %s11, 0
      %p115 = por %p113, %p114
      %p116 = scmp.ne.s32.totalorder %s108, %s110
      %p117 = scmp.eq.s32.totalorder %s16, 3
      %p118 = por %p116, %p117
      %p119 = scmp.ne.s32.totalorder %s110, %s111
      %p120 = scmp.eq.s32.totalorder %s16, 0
      %p121 = por %p119, %p120
      %p122 = scmp.ne.s32.totalorder %s110, %s111
      %p123 = scmp.eq.s32.totalorder %s17, 3
      %p124 = por %p122, %p123
      %p126 = scmp.ne.s32.totalorder %s111, %s125
      %p127 = scmp.eq.s32.totalorder %s17, 0
      %p128 = por %p126, %p127
      %s129 = ssub.s32 %s11, %s18
      %p130 = scmp.eq.s32.totalorder %s129, 0
      %s132 = sadd.s32 %s131, 1
      %s133 = scalar_select %p130, %s131, %s132
      %p136 = pneg %p130
      %p137 = scmp.eq.s32.totalorder %s11, 3
      %p138 = por %p136, %p137
      %p139 = scmp.ne.s32.totalorder %s131, %s134
      %p140 = scmp.eq.s32.totalorder %s11, 0
      %p141 = por %p139, %p140
      %p142 = scmp.ne.s32.totalorder %s131, %s134
      %p143 = scmp.eq.s32.totalorder %s16, 3
      %p144 = por %p142, %p143
      %p145 = scmp.ne.s32.totalorder %s134, %s135
      %p146 = scmp.eq.s32.totalorder %s16, 0
      %p147 = por %p145, %p146
      %p148 = scmp.ne.s32.totalorder %s134, %s135
      %p149 = scmp.eq.s32.totalorder %s17, 3
      %p150 = por %p148, %p149
      %p152 = scmp.ne.s32.totalorder %s135, %s151
      %p153 = scmp.eq.s32.totalorder %s17, 0
      %p154 = por %p152, %p153
      %p155 = scmp.le.s32.totalorder 1, %s11
      %p156 = scmp.lt.s32.totalorder %s11, 5
      %p157 = pnand %p155, %p156
      %p158 = pneg %p157
      // Predicated region
      $region9: #{tpu_custom_call.1} parent=5 // pred_check
        _
      $region10: #{tpu_custom_call.1} parent=5 // pred_check_branch
        %160 = sbr.rel (%p157) target = $region12
      $region11: #{tpu_custom_call.1} parent=5 // pred_region
        %s161 = ssub.s32 %s11, 1
        // Predicated region
        $region13: #{tpu_custom_call.1} parent=11 // pred_check
          %p162 = pneg %p58
        $region14: #{tpu_custom_call.1} parent=11 // pred_check_branch
          %164 = sbr.rel (%p162) target = $region16
        $region15: #{tpu_custom_call.1} parent=11 // pred_region
          _
        $region16: #{tpu_custom_call.1} parent=11 // pred_fallthru
          _
        // Predicated region
        $region17: #{tpu_custom_call.1} parent=11 // pred_check
          %p165 = pneg %p79
        $region18: #{tpu_custom_call.1} parent=11 // pred_check_branch
          %167 = sbr.rel (%p165) target = $region20
        $region19: #{tpu_custom_call.1} parent=11 // pred_region
          _
        $region20: #{tpu_custom_call.1} parent=11 // pred_fallthru
          _
        // Predicated region
        $region21: #{tpu_custom_call.1} parent=11 // pred_check
          %p168 = pneg %p100
        $region22: #{tpu_custom_call.1} parent=11 // pred_check_branch
          %170 = sbr.rel (%p168) target = $region24
        $region23: #{tpu_custom_call.1} parent=11 // pred_region
          _
        $region24: #{tpu_custom_call.1} parent=11 // pred_fallthru
          _
        // Predicated region
        $region25: #{tpu_custom_call.1} parent=11 // pred_check
          %p171 = pneg %p121
        $region26: #{tpu_custom_call.1} parent=11 // pred_check_branch
          %173 = sbr.rel (%p171) target = $region28
        $region27: #{tpu_custom_call.1} parent=11 // pred_region
          _
        $region28: #{tpu_custom_call.1} parent=11 // pred_fallthru
          _
      $region12: #{tpu_custom_call.1} parent=5 // pred_fallthru
        _
      %p174 = scmp.lt.s32.totalorder %s11, 4
      // Predicated region
      $region29: #{tpu_custom_call.1} parent=5 // pred_check
        %p175 = pneg %p174
      $region30: #{tpu_custom_call.1} parent=5 // pred_check_branch
        %177 = sbr.rel (%p175) target = $region32
      $region31: #{tpu_custom_call.1} parent=5 // pred_region
        // Predicated region
        $region33: #{tpu_custom_call.1} parent=31 // pred_check
          %p178 = pneg %p31
        $region34: #{tpu_custom_call.1} parent=31 // pred_check_branch
          %180 = sbr.rel (%p178) target = $region36
        $region35: #{tpu_custom_call.1} parent=31 // pred_region
          %s181 = smul.u32 7, %s11
          %s182 = ssub.s32 25, %s181
          %p183 = scmp.lt.s32.totalorder %s182, 7
          %s184 = scalar_select %p183, %s182, 7
          %s185 = smul.u32 128, %s184
          %p186 = scmp.lt.s32.totalorder %s181, 24
          %s187 = scalar_select %p186, %s181, 24
          %s188 = smul.addr %s187, 8
          %s189 = scalar_lea.vmem %s0, %s188
          %s190 = smul.u32 7, %s11
          %s191 = ssub.s32 25, %s190
          %p192 = scmp.lt.s32.totalorder %s191, 7
          %s193 = scalar_select %p192, %s191, 7
          %s194 = smul.u32 128, %s193
        $region36: #{tpu_custom_call.1} parent=31 // pred_fallthru
          _
      $region32: #{tpu_custom_call.1} parent=5 // pred_fallthru
        _
      %p195 = scmp.le.s32.totalorder 1, %s11
      %p196 = scmp.lt.s32.totalorder %s11, 5
      %p197 = pnand %p195, %p196
      %p198 = pneg %p197
      // Predicated region
      $region37: #{tpu_custom_call.1} parent=5 // pred_check
        _
      $region38: #{tpu_custom_call.1} parent=5 // pred_check_branch
        %200 = sbr.rel (%p197) target = $region40
      $region39: #{tpu_custom_call.1} parent=5 // pred_region
        %s201 = ssub.s32 %s11, 1
        %s202 = smul.u32 7, %s16
        %s203 = ssub.s32 25, %s202
        %p204 = scmp.lt.s32.totalorder %s203, 7
        %s205 = scalar_select %p204, %s203, 7
        %s206 = smul.u32 128, %s205
        %p207 = scmp.lt.s32.totalorder %s202, 24
        %s208 = scalar_select %p207, %s202, 24
        %s209 = smul.addr %s208, 8
        %s210 = scalar_lea.vmem %s0, %s209
        %p211 = pneg %p37
        %p212 = pneg %p34
        %p213 = pneg %p58
        %p214 = pneg %p55
        %p215 = pneg %p79
        %p216 = pneg %p76
        %p217 = pneg %p100
        %p218 = pneg %p97
        %p219 = pneg %p121
        %p220 = pneg %p118
        %p221 = pneg %p147
        %p222 = pneg %p144
        %s223 = sand.u32 %s134, 1
        %s224 = sand.u32 %s134, 1
        %s225 = smul.addr %s224, 56
        %s226 = scalar_lea.vmem [#allocation2], %s225
        %s227 = smul.u32 7, %s16
        %s228 = ssub.s32 25, %s227
        %p229 = scmp.lt.s32.totalorder %s228, 7
        %s230 = scalar_select %p229, %s228, 7
        %s231 = smul.u32 128, %s230
        %p232 = scmp.lt.s32.totalorder %s227, 24
        %s233 = scalar_select %p232, %s227, 24
        %s234 = smul.addr %s233, 8
        %s235 = scalar_lea.vmem %s0, %s234
        %s236 = smul.u32 7, %s16
        %s237 = ssub.s32 25, %s236
        %p238 = scmp.lt.s32.totalorder %s237, 7
        %s239 = scalar_select %p238, %s237, 7
        %s240 = smul.u32 128, %s239
        %s241 = smul.u32 7, %s16
        %s242 = ssub.s32 25, %s241
        %p243 = scmp.lt.s32.totalorder %s242, 7
        %s244 = scalar_select %p243, %s242, 7
        %s245 = smul.u32 128, %s244
        %v247 = vld [vmem:[%s235] sm:$0xff]
        %v248 = vld [vmem:[%s235 + $0x8] sm:$0xff]
        %v249 = vld [vmem:[%s235 + $0x10] sm:$0xff]
        %v250 = vld [vmem:[%s235 + $0x18] sm:$0xff]
        %v251 = vld [vmem:[%s235 + $0x20] sm:$0xff]
        %v252 = vld [vmem:[%s235 + $0x28] sm:$0xff]
        %v253 = vld [vmem:[%s235 + $0x30] sm:$0xff]
        %v254 = vpack.c.bf16 %v248, %v247
        %v255 = vpack.c.bf16 %v250, %v249
        %v256 = vpack.c.bf16 %v252, %v251
        %v257 = vpack.c.bf16 %v253, %v253
        %v258 = vld [vmem:[%s4] sm:$0x1]
        %v259 = vld [vmem:[%s4 + $0x1] sm:$0x1]
        %v260 = vld [vmem:[%s4 + $0x2] sm:$0x1]
        %v261 = vld [vmem:[%s1] sm:$0xf]
        %v262 = vld [vmem:[%s1 + $0x4] sm:$0xf]
        %v263 = vld [vmem:[%s1 + $0x8] sm:$0xf]
        %v264 = vld [vmem:[%s1 + $0xc] sm:$0xf]
        %v265 = vld [vmem:[%s1 + $0x10] sm:$0xf]
        %v266 = vld [vmem:[%s1 + $0x14] sm:$0xf]
        %v267 = vld [vmem:[%s1 + $0x18] sm:$0xf]
        %v268 = vld [vmem:[%s1 + $0x1c] sm:$0xf]
        %v269 = vld [vmem:[%s1 + $0x20] sm:$0xf]
        %v270 = vld [vmem:[%s1 + $0x24] sm:$0xf]
        %v271 = vld [vmem:[%s1 + $0x28] sm:$0xf]
        %v272 = vld [vmem:[%s1 + $0x2c] sm:$0xf]
        %v273 = vlaneseq
        %v274 = vshrl.u32 %v273, 7
        %v275 = vsub.s32 0, %v274
        %v276 = vrot.slane %v258, %v275
        %v289 = vunpack.c.l.b16 %v261
        %v290 = vunpack.c.l.b16 %v262
        %v291 = vunpack.c.l.b16 %v263
        %v292 = vunpack.c.l.b16 %v264
        %v293 = vunpack.c.l.b16 %v265
        %v294 = vunpack.c.l.b16 %v266
        %v295 = vunpack.c.l.b16 %v267
        %v296 = vunpack.c.l.b16 %v268
        %v297 = vunpack.c.l.b16 %v269
        %v298 = vunpack.c.l.b16 %v270
        %v299 = vunpack.c.l.b16 %v271
        %v300 = vunpack.c.l.b16 %v272
        %v301 = vpack.c.b16 %v290, %v289
        %v302 = vpack.c.b16 %v292, %v291
        %v303 = vpack.c.b16 %v294, %v293
        %v304 = vpack.c.b16 %v296, %v295
        %v305 = vpack.c.b16 %v298, %v297
        %v306 = vpack.c.b16 %v300, %v299
        %vm313 = vcmask 785408
        %v315 = vsel %vm313, %v254, 0
        %v318 = vsel %vm313, %v255, 0
        %v321 = vsel %vm313, %v256, 0
        %v324 = vsel %vm313, %v257, 0
        %326 = vmatprep.subr.bf16.mxu0 0
        %327 = vmatpush1.bf16.msra.mxu0 %v301
        %328 = vmatprep.subr.bf16.mxu0 0
        %329 = vmatpush1.bf16.msra.mxu0 %v302
        %330 = vmatprep.subr.bf16.mxu0 0
        %331 = vmatpush1.bf16.msra.mxu0 %v303
        %332 = vmatprep.subr.bf16.mxu0 0
        %333 = vmatpush1.bf16.msra.mxu0 %v304
        %334 = vmatprep.subr.bf16.mxu0 0
        %335 = vmatpush1.bf16.msra.mxu0 %v305
        %336 = vmatprep.subr.bf16.mxu0 0
        %337 = vmatpush1.bf16.msra.mxu0 %v306
        %338 = vmatprep.subr.bf16.mxu0 0
        %339 = vmatpush1.bf16.msra.mxu0 0
        %340 = vmatprep.subr.bf16.mxu0 0
        %341 = vmatpush1.bf16.msra.mxu0 0
        %342 = vmatprep.subr.bf16.mxu0 0
        %343 = vmatpush1.bf16.msra.mxu0 0
        %344 = vmatprep.subr.bf16.mxu0 0
        %345 = vmatpush1.bf16.msra.mxu0 0
        %346 = vmatprep.subr.bf16.mxu0 0
        %347 = vmatpush1.bf16.msra.mxu0 0
        %348 = vmatprep.subr.bf16.mxu0 0
        %349 = vmatpush1.bf16.msra.mxu0 0
        %350 = vmatprep.subr.bf16.mxu0 0
        %351 = vmatpush1.bf16.msra.mxu0 0
        %352 = vmatprep.subr.bf16.mxu0 0
        %353 = vmatpush1.bf16.msra.mxu0 0
        %354 = vmatprep.subr.bf16.mxu0 0
        %355 = vmatpush1.bf16.msra.mxu0 0
        %356 = vmatprep.subr.bf16.mxu0 0
        %357 = vmatpush1.bf16.msra.mxu0 0
        %358 = vmatprep.mubr.bf16.mxu0 0
        %359 = vmatmul.mubr.bf16.gmra.mrb[0].mxu0 %v315
        %v360 = vpop.f32.mrb[0].mxu0
        %v361 = vadd.f32 %v276, %v360
        %v362 = vpop.f32.mrb[0].mxu0
        %v363 = vpop.f32.mrb[0].mxu0
        %v364 = vadd.f32 %v276, %v363
        %v365 = vpop.f32.mrb[0].mxu0
        %366 = vmatprep.mubr.bf16.mxu0 0
        %367 = vmatmul.mubr.bf16.gmra.mrb[0].mxu0 %v318
        %v368 = vpop.f32.mrb[0].mxu0
        %v369 = vadd.f32 %v276, %v368
        %v370 = vpop.f32.mrb[0].mxu0
        %v371 = vpop.f32.mrb[0].mxu0
        %v372 = vadd.f32 %v276, %v371
        %v373 = vpop.f32.mrb[0].mxu0
        %374 = vmatprep.mubr.bf16.mxu0 0
        %375 = vmatmul.mubr.bf16.gmra.mrb[0].mxu0 %v321
        %v376 = vpop.f32.mrb[0].mxu0
        %v377 = vadd.f32 %v276, %v376
        %v378 = vpop.f32.mrb[0].mxu0
        %v379 = vpop.f32.mrb[0].mxu0
        %v380 = vadd.f32 %v276, %v379
        %v381 = vpop.f32.mrb[0].mxu0
        %382 = vmatprep.mubr.bf16.mxu0 0
        %383 = vmatmul.mubr.bf16.gmra.mrb[0].mxu0 %v324
        %v384 = vpop.f32.mrb[0].mxu0
        %v385 = vadd.f32 %v276, %v384
        %v386 = vpop.f32.mrb[0].mxu0
        %v387 = vpop.f32.mrb[0].mxu0
        %v388 = vpop.f32.mrb[0].mxu0
        %389 = vdwg.mxu0
        %v390 = vmax.f32 %v361, 0.0
        %v391 = vmax.f32 %v364, 0.0
        %v392 = vmax.f32 %v369, 0.0
        %v393 = vmax.f32 %v372, 0.0
        %v394 = vmax.f32 %v377, 0.0
        %v395 = vmax.f32 %v380, 0.0
        %v396 = vmax.f32 %v385, 0.0
        %v397 = vpack.c.bf16 %v391, %v390
        %v398 = vpack.c.bf16 %v393, %v392
        %v399 = vpack.c.bf16 %v395, %v394
        %v400 = vpack.c.bf16 %v396, %v396
        %v401 = vld [vmem:[%s2] sm:$0xf]
        %v402 = vld [vmem:[%s2 + $0x4] sm:$0xf]
        %v403 = vld [vmem:[%s2 + $0x8] sm:$0xf]
        %v404 = vld [vmem:[%s2 + $0xc] sm:$0xf]
        %v405 = vld [vmem:[%s2 + $0x10] sm:$0xf]
        %v406 = vld [vmem:[%s2 + $0x14] sm:$0xf]
        %v407 = vld [vmem:[%s2 + $0x18] sm:$0xf]
        %v408 = vld [vmem:[%s2 + $0x1c] sm:$0xf]
        %v409 = vlaneseq
        %v410 = vshrl.u32 %v409, 7
        %v411 = vsub.s32 0, %v410
        %v412 = vrot.slane %v259, %v411
        %v421 = vunpack.c.l.b16 %v401
        %v422 = vunpack.c.l.b16 %v402
        %v423 = vunpack.c.l.b16 %v403
        %v424 = vunpack.c.l.b16 %v404
        %v425 = vunpack.c.l.b16 %v405
        %v426 = vunpack.c.l.b16 %v406
        %v427 = vunpack.c.l.b16 %v407
        %v428 = vunpack.c.l.b16 %v408
        %v429 = vpack.c.b16 %v422, %v421
        %v430 = vpack.c.b16 %v424, %v423
        %v431 = vpack.c.b16 %v426, %v425
        %v432 = vpack.c.b16 %v428, %v427
        %vm437 = vcmask 523264
        %v439 = vsel %vm437, %v397, 0
        %v442 = vsel %vm437, %v398, 0
        %v445 = vsel %vm437, %v399, 0
        %v448 = vsel %vm437, %v400, 0
        %450 = vmatprep.subr.bf16.mxu0 0
        %451 = vmatpush1.bf16.msra.mxu0 %v429
        %452 = vmatprep.subr.bf16.mxu0 0
        %453 = vmatpush1.bf16.msra.mxu0 %v430
        %454 = vmatprep.subr.bf16.mxu0 0
        %455 = vmatpush1.bf16.msra.mxu0 %v431
        %456 = vmatprep.subr.bf16.mxu0 0
        %457 = vmatpush1.bf16.msra.mxu0 %v432
        %458 = vmatprep.subr.bf16.mxu0 0
        %459 = vmatpush1.bf16.msra.mxu0 0
        %460 = vmatprep.subr.bf16.mxu0 0
        %461 = vmatpush1.bf16.msra.mxu0 0
        %462 = vmatprep.subr.bf16.mxu0 0
        %463 = vmatpush1.bf16.msra.mxu0 0
        %464 = vmatprep.subr.bf16.mxu0 0
        %465 = vmatpush1.bf16.msra.mxu0 0
        %466 = vmatprep.subr.bf16.mxu0 0
        %467 = vmatpush1.bf16.msra.mxu0 0
        %468 = vmatprep.subr.bf16.mxu0 0
        %469 = vmatpush1.bf16.msra.mxu0 0
        %470 = vmatprep.subr.bf16.mxu0 0
        %471 = vmatpush1.bf16.msra.mxu0 0
        %472 = vmatprep.subr.bf16.mxu0 0
        %473 = vmatpush1.bf16.msra.mxu0 0
        %474 = vmatprep.subr.bf16.mxu0 0
        %475 = vmatpush1.bf16.msra.mxu0 0
        %476 = vmatprep.subr.bf16.mxu0 0
        %477 = vmatpush1.bf16.msra.mxu0 0
        %478 = vmatprep.subr.bf16.mxu0 0
        %479 = vmatpush1.bf16.msra.mxu0 0
        %480 = vmatprep.subr.bf16.mxu0 0
        %481 = vmatpush1.bf16.msra.mxu0 0
        %482 = vmatprep.mubr.bf16.mxu0 0
        %483 = vmatmul.mubr.bf16.gmra.mrb[0].mxu0 %v439
        %v484 = vpop.f32.mrb[0].mxu0
        %v485 = vadd.f32 %v412, %v484
        %v486 = vpop.f32.mrb[0].mxu0
        %v487 = vpop.f32.mrb[0].mxu0
        %v488 = vadd.f32 %v412, %v487
        %v489 = vpop.f32.mrb[0].mxu0
        %490 = vmatprep.mubr.bf16.mxu0 0
        %491 = vmatmul.mubr.bf16.gmra.mrb[0].mxu0 %v442
        %v492 = vpop.f32.mrb[0].mxu0
        %v493 = vadd.f32 %v412, %v492
        %v494 = vpop.f32.mrb[0].mxu0
        %v495 = vpop.f32.mrb[0].mxu0
        %v496 = vadd.f32 %v412, %v495
        %v497 = vpop.f32.mrb[0].mxu0
        %498 = vmatprep.mubr.bf16.mxu0 0
        %499 = vmatmul.mubr.bf16.gmra.mrb[0].mxu0 %v445
        %v500 = vpop.f32.mrb[0].mxu0
        %v501 = vadd.f32 %v412, %v500
        %v502 = vpop.f32.mrb[0].mxu0
        %v503 = vpop.f32.mrb[0].mxu0
        %v504 = vadd.f32 %v412, %v503
        %v505 = vpop.f32.mrb[0].mxu0
        %506 = vmatprep.mubr.bf16.mxu0 0
        %507 = vmatmul.mubr.bf16.gmra.mrb[0].mxu0 %v448
        %v508 = vpop.f32.mrb[0].mxu0
        %v509 = vadd.f32 %v412, %v508
        %v510 = vpop.f32.mrb[0].mxu0
        %v511 = vpop.f32.mrb[0].mxu0
        %v512 = vpop.f32.mrb[0].mxu0
        %513 = vdwg.mxu0
        %v514 = vmax.f32 %v485, 0.0
        %v515 = vmax.f32 %v488, 0.0
        %v516 = vmax.f32 %v493, 0.0
        %v517 = vmax.f32 %v496, 0.0
        %v518 = vmax.f32 %v501, 0.0
        %v519 = vmax.f32 %v504, 0.0
        %v520 = vmax.f32 %v509, 0.0
        %v521 = vpack.c.bf16 %v515, %v514
        %v522 = vpack.c.bf16 %v517, %v516
        %v523 = vpack.c.bf16 %v519, %v518
        %v524 = vpack.c.bf16 %v520, %v520
        %v525 = vld [vmem:[%s3] sm:$0xf]
        %v526 = vld [vmem:[%s3 + $0x4] sm:$0xf]
        %v527 = vld [vmem:[%s3 + $0x8] sm:$0xf]
        %v528 = vld [vmem:[%s3 + $0xc] sm:$0xf]
        %v529 = vlaneseq
        %v530 = vshrl.u32 %v529, 7
        %v531 = vsub.s32 0, %v530
        %v532 = vrot.slane %v260, %v531
        %v537 = vunpack.c.l.b16 %v525
        %v538 = vunpack.c.l.b16 %v526
        %v539 = vunpack.c.l.b16 %v527
        %v540 = vunpack.c.l.b16 %v528
        %v541 = vpack.c.b16 %v538, %v537
        %v542 = vpack.c.b16 %v540, %v539
        %vm545 = vcmask 261120
        %v547 = vsel %vm545, %v521, 0
        %v550 = vsel %vm545, %v522, 0
        %v553 = vsel %vm545, %v523, 0
        %v556 = vsel %vm545, %v524, 0
        %558 = vmatprep.subr.bf16.mxu0 0
        %559 = vmatpush1.bf16.msra.mxu0 %v541
        %560 = vmatprep.subr.bf16.mxu0 0
        %561 = vmatpush1.bf16.msra.mxu0 %v542
        %562 = vmatprep.subr.bf16.mxu0 0
        %563 = vmatpush1.bf16.msra.mxu0 0
        %564 = vmatprep.subr.bf16.mxu0 0
        %565 = vmatpush1.bf16.msra.mxu0 0
        %566 = vmatprep.subr.bf16.mxu0 0
        %567 = vmatpush1.bf16.msra.mxu0 0
        %568 = vmatprep.subr.bf16.mxu0 0
        %569 = vmatpush1.bf16.msra.mxu0 0
        %570 = vmatprep.subr.bf16.mxu0 0
        %571 = vmatpush1.bf16.msra.mxu0 0
        %572 = vmatprep.subr.bf16.mxu0 0
        %573 = vmatpush1.bf16.msra.mxu0 0
        %574 = vmatprep.subr.bf16.mxu0 0
        %575 = vmatpush1.bf16.msra.mxu0 0
        %576 = vmatprep.subr.bf16.mxu0 0
        %577 = vmatpush1.bf16.msra.mxu0 0
        %578 = vmatprep.subr.bf16.mxu0 0
        %579 = vmatpush1.bf16.msra.mxu0 0
        %580 = vmatprep.subr.bf16.mxu0 0
        %581 = vmatpush1.bf16.msra.mxu0 0
        %582 = vmatprep.subr.bf16.mxu0 0
        %583 = vmatpush1.bf16.msra.mxu0 0
        %584 = vmatprep.subr.bf16.mxu0 0
        %585 = vmatpush1.bf16.msra.mxu0 0
        %586 = vmatprep.subr.bf16.mxu0 0
        %587 = vmatpush1.bf16.msra.mxu0 0
        %588 = vmatprep.subr.bf16.mxu0 0
        %589 = vmatpush1.bf16.msra.mxu0 0
        %590 = vmatprep.mubr.bf16.mxu0 0
        %591 = vmatmul.mubr.bf16.gmra.mrb[0].mxu0 %v547
        %v592 = vpop.f32.mrb[0].mxu0
        %v593 = vadd.f32 %v532, %v592
        %v594 = vpop.f32.mrb[0].mxu0
        %v595 = vpop.f32.mrb[0].mxu0
        %v596 = vadd.f32 %v532, %v595
        %v597 = vpop.f32.mrb[0].mxu0
        %598 = vmatprep.mubr.bf16.mxu0 0
        %599 = vmatmul.mubr.bf16.gmra.mrb[0].mxu0 %v550
        %v600 = vpop.f32.mrb[0].mxu0
        %v601 = vadd.f32 %v532, %v600
        %v602 = vpop.f32.mrb[0].mxu0
        %v603 = vpop.f32.mrb[0].mxu0
        %v604 = vadd.f32 %v532, %v603
        %v605 = vpop.f32.mrb[0].mxu0
        %606 = vmatprep.mubr.bf16.mxu0 0
        %607 = vmatmul.mubr.bf16.gmra.mrb[0].mxu0 %v553
        %v608 = vpop.f32.mrb[0].mxu0
        %v609 = vadd.f32 %v532, %v608
        %v610 = vpop.f32.mrb[0].mxu0
        %v611 = vpop.f32.mrb[0].mxu0
        %v612 = vadd.f32 %v532, %v611
        %v613 = vpop.f32.mrb[0].mxu0
        %614 = vmatprep.mubr.bf16.mxu0 0
        %615 = vmatmul.mubr.bf16.gmra.mrb[0].mxu0 %v556
        %v616 = vpop.f32.mrb[0].mxu0
        %v617 = vadd.f32 %v532, %v616
        %v618 = vpop.f32.mrb[0].mxu0
        %v619 = vpop.f32.mrb[0].mxu0
        %v620 = vpop.f32.mrb[0].mxu0
        %621 = vdwg.mxu0
        %v622 = vmax.f32 %v593, 0.0
        %v623 = vmax.f32 %v596, 0.0
        %v624 = vmax.f32 %v601, 0.0
        %v625 = vmax.f32 %v604, 0.0
        %v626 = vmax.f32 %v609, 0.0
        %v627 = vmax.f32 %v612, 0.0
        %v628 = vmax.f32 %v617, 0.0
        %vm629 = vcmask 130048
        %630 = vst.msk [vmem:[%s226] sm:$0xff] %vm629, %v622
        %631 = vst.msk [vmem:[%s226 + $0x8] sm:$0xff] %vm629, %v623
        %632 = vst.msk [vmem:[%s226 + $0x10] sm:$0xff] %vm629, %v624
        %633 = vst.msk [vmem:[%s226 + $0x18] sm:$0xff] %vm629, %v625
        %634 = vst.msk [vmem:[%s226 + $0x20] sm:$0xff] %vm629, %v626
        %635 = vst.msk [vmem:[%s226 + $0x28] sm:$0xff] %vm629, %v627
        %636 = vst.msk [vmem:[%s226 + $0x30] sm:$0xff] %vm629, %v628
        %s637 = sand.u32 %s134, 1
        %s638 = sand.u32 %s134, 1
        %s639 = smul.addr %s638, 56
        %s640 = scalar_lea.vmem [#allocation2], %s639
        // Predicated region
        $region41: #{tpu_custom_call.1} parent=39 // pred_check
          %p641 = pneg %p144
        $region42: #{tpu_custom_call.1} parent=39 // pred_check_branch
          %643 = sbr.rel (%p641) target = $region44
        $region43: #{tpu_custom_call.1} parent=39 // pred_region
          %s644 = smul.u32 7, %s16
          %s645 = ssub.s32 25, %s644
          %p646 = scmp.lt.s32.totalorder %s645, 7
          %s647 = scalar_select %p646, %s645, 7
          %s648 = smul.u32 128, %s647
          %p649 = scmp.ne.s32.totalorder 0, %s648
          %s650 = smul.addr %s644, 8
          %s651 = scalar_lea.vmem %s5, %s650
          // Predicated region
          $region45: #{tpu_custom_call.1} parent=43 // pred_check
            %p652 = pneg %p649
          $region46: #{tpu_custom_call.1} parent=43 // pred_check_branch
            %654 = sbr.rel (%p652) target = $region48
          $region47: #{tpu_custom_call.1} parent=43 // pred_region
            // Predicated region
            $region49: #{tpu_custom_call.1} parent=47 // pred_check
              _
            $region50: #{tpu_custom_call.1} parent=47 // pred_check_branch
              %656 = sbr.rel (0) target = $region52
            $region51: #{tpu_custom_call.1} parent=47 // pred_region
              // Predicated region
              $region71: #{tpu_custom_call.1} parent=51 // pred_check
                _
              $region72: #{tpu_custom_call.1} parent=51 // pred_check_branch
                %718 = sbr.rel (0) target = $region74
              $region73: #{tpu_custom_call.1} parent=51 // pred_region
                %s719 = sdiv.u32.pop %s647, 7
                %s720 = srem.u32.pop %s647, 7
                // While loop
                $region75: #{tpu_custom_call.1} parent=73 // loop_pre_header
                  _
                $region76: #{tpu_custom_call.1} parent=73 // loop_header
                  %s722 = sphi 0, %s724
                  %p723 = scmp.ge.s32.totalorder %s722, %s719
                  %s727 = sphi 0, %s746
                  %s728 = sphi %s640, %s749
                  %s729 = sphi %s651, %s750
                $region77: #{tpu_custom_call.1} parent=73 // loop_header_branch
                  %726 = sbr.rel (%p723) target = $region81
                $region78: #{tpu_custom_call.1} parent=73 // loop_body
                  %v730 = vld [vmem:[%s728] sm:$0xff]
                  %731 = vst [vmem:[%s729] sm:$0xff] %v730
                  %v732 = vld [vmem:[%s728 + $0x8] sm:$0xff]
                  %733 = vst [vmem:[%s729 + $0x8] sm:$0xff] %v732
                  %v734 = vld [vmem:[%s728 + $0x10] sm:$0xff]
                  %735 = vst [vmem:[%s729 + $0x10] sm:$0xff] %v734
                  %v736 = vld [vmem:[%s728 + $0x18] sm:$0xff]
                  %737 = vst [vmem:[%s729 + $0x18] sm:$0xff] %v736
                  %v738 = vld [vmem:[%s728 + $0x20] sm:$0xff]
                  %739 = vst [vmem:[%s729 + $0x20] sm:$0xff] %v738
                  %v740 = vld [vmem:[%s728 + $0x28] sm:$0xff]
                  %741 = vst [vmem:[%s729 + $0x28] sm:$0xff] %v740
                  %v742 = vld [vmem:[%s728 + $0x30] sm:$0xff]
                  %743 = vst [vmem:[%s729 + $0x30] sm:$0xff] %v742
                  %s744 = sadd.s32 1, %s727
                  %p745 = scmp.ge.s32.totalorder %s744, %s719
                  %s746 = scalar_select %p745, 0, %s744
                  %s747 = smul.u32 %s746, 56
                  %s748 = smul.u32 %s746, 56
                  %s749 = scalar_lea.vmem %s640, %s747 [#allocation2]
                  %s750 = scalar_lea.vmem %s651, %s748
                $region79: #{tpu_custom_call.1} parent=73 // loop_footer
                  %s724 = sadd.s32 %s722, 1
                $region80: #{tpu_custom_call.1} parent=73 // loop_footer_branch
                  %721 = sbr.rel target = $region76
                $region81: #{tpu_custom_call.1} parent=73 // loop_exit
                  _
                %s751 = sdiv.u32.pop %s647, 7
                %s752 = srem.u32.pop %s647, 7
                %s753 = smul.u32 %s751, 7
                %s754 = smul.u32 8, %s753
                %s755 = scalar_lea.vmem %s640, %s754 [#allocation2]
                %s756 = smul.u32 8, %s753
                %s757 = scalar_lea.vmem %s651, %s756
                // While loop
                $region82: #{tpu_custom_call.1} parent=73 // loop_pre_header
                  _
                $region83: #{tpu_custom_call.1} parent=73 // loop_header
                  %s759 = sphi 0, %s761
                  %p760 = scmp.ge.s32.totalorder %s759, %s752
                  %s764 = sphi 0, %s771
                  %s765 = sphi %s755, %s774
                  %s766 = sphi %s757, %s775
                $region84: #{tpu_custom_call.1} parent=73 // loop_header_branch
                  %763 = sbr.rel (%p760) target = $region88
                $region85: #{tpu_custom_call.1} parent=73 // loop_body
                  %v767 = vld [vmem:[%s765] sm:$0xff]
                  %768 = vst [vmem:[%s766] sm:$0xff] %v767
                  %s769 = sadd.s32 1, %s764
                  %p770 = scmp.ge.s32.totalorder %s769, %s752
                  %s771 = scalar_select %p770, 0, %s769
                  %s772 = smul.u32 %s771, 8
                  %s773 = smul.u32 %s771, 8
                  %s774 = scalar_lea.vmem %s755, %s772 [#allocation2]
                  %s775 = scalar_lea.vmem %s757, %s773
                $region86: #{tpu_custom_call.1} parent=73 // loop_footer
                  %s761 = sadd.s32 %s759, 1
                $region87: #{tpu_custom_call.1} parent=73 // loop_footer_branch
                  %758 = sbr.rel target = $region83
                $region88: #{tpu_custom_call.1} parent=73 // loop_exit
                  _
              $region74: #{tpu_custom_call.1} parent=51 // pred_fallthru
                _
              // Predicated region
              $region89: #{tpu_custom_call.1} parent=51 // pred_check
                _
              $region90: #{tpu_custom_call.1} parent=51 // pred_check_branch
                %777 = sbr.rel target = $region92
              $region91: #{tpu_custom_call.1} parent=51 // pred_region
                _
              $region92: #{tpu_custom_call.1} parent=51 // pred_fallthru
                _
            $region52: #{tpu_custom_call.1} parent=47 // pred_fallthru
              _
            // Predicated region
            $region53: #{tpu_custom_call.1} parent=47 // pred_check
              _
            $region54: #{tpu_custom_call.1} parent=47 // pred_check_branch
              %658 = sbr.rel target = $region56
            $region55: #{tpu_custom_call.1} parent=47 // pred_region
              %s660 = sdiv.u32.pop %s647, 7
              %s661 = srem.u32.pop %s647, 7
              // While loop
              $region57: #{tpu_custom_call.1} parent=55 // loop_pre_header
                _
              $region58: #{tpu_custom_call.1} parent=55 // loop_header
                %s663 = sphi 0, %s665
                %p664 = scmp.ge.s32.totalorder %s663, %s660
                %s668 = sphi 0, %s687
                %s669 = sphi %s640, %s690
                %s670 = sphi %s651, %s691
              $region59: #{tpu_custom_call.1} parent=55 // loop_header_branch
                %667 = sbr.rel (%p664) target = $region63
              $region60: #{tpu_custom_call.1} parent=55 // loop_body
                %v671 = vld [vmem:[%s669] sm:$0xff]
                %672 = vst [vmem:[%s670] sm:$0xff] %v671
                %v673 = vld [vmem:[%s669 + $0x8] sm:$0xff]
                %674 = vst [vmem:[%s670 + $0x8] sm:$0xff] %v673
                %v675 = vld [vmem:[%s669 + $0x10] sm:$0xff]
                %676 = vst [vmem:[%s670 + $0x10] sm:$0xff] %v675
                %v677 = vld [vmem:[%s669 + $0x18] sm:$0xff]
                %678 = vst [vmem:[%s670 + $0x18] sm:$0xff] %v677
                %v679 = vld [vmem:[%s669 + $0x20] sm:$0xff]
                %680 = vst [vmem:[%s670 + $0x20] sm:$0xff] %v679
                %v681 = vld [vmem:[%s669 + $0x28] sm:$0xff]
                %682 = vst [vmem:[%s670 + $0x28] sm:$0xff] %v681
                %v683 = vld [vmem:[%s669 + $0x30] sm:$0xff]
                %684 = vst [vmem:[%s670 + $0x30] sm:$0xff] %v683
                %s685 = sadd.s32 1, %s668
                %p686 = scmp.ge.s32.totalorder %s685, %s660
                %s687 = scalar_select %p686, 0, %s685
                %s688 = smul.u32 %s687, 56
                %s689 = smul.u32 %s687, 56
                %s690 = scalar_lea.vmem %s640, %s688 [#allocation2]
                %s691 = scalar_lea.vmem %s651, %s689
              $region61: #{tpu_custom_call.1} parent=55 // loop_footer
                %s665 = sadd.s32 %s663, 1
              $region62: #{tpu_custom_call.1} parent=55 // loop_footer_branch
                %662 = sbr.rel target = $region58
              $region63: #{tpu_custom_call.1} parent=55 // loop_exit
                _
              %s692 = sdiv.u32.pop %s647, 7
              %s693 = srem.u32.pop %s647, 7
              %s694 = smul.u32 %s692, 7
              %s695 = smul.u32 8, %s694
              %s696 = scalar_lea.vmem %s640, %s695 [#allocation2]
              %s697 = smul.u32 8, %s694
              %s698 = scalar_lea.vmem %s651, %s697
              // While loop
              $region64: #{tpu_custom_call.1} parent=55 // loop_pre_header
                _
              $region65: #{tpu_custom_call.1} parent=55 // loop_header
                %s700 = sphi 0, %s702
                %p701 = scmp.ge.s32.totalorder %s700, %s693
                %s705 = sphi 0, %s712
                %s706 = sphi %s696, %s715
                %s707 = sphi %s698, %s716
              $region66: #{tpu_custom_call.1} parent=55 // loop_header_branch
                %704 = sbr.rel (%p701) target = $region70
              $region67: #{tpu_custom_call.1} parent=55 // loop_body
                %v708 = vld [vmem:[%s706] sm:$0xff]
                %709 = vst [vmem:[%s707] sm:$0xff] %v708
                %s710 = sadd.s32 1, %s705
                %p711 = scmp.ge.s32.totalorder %s710, %s693
                %s712 = scalar_select %p711, 0, %s710
                %s713 = smul.u32 %s712, 8
                %s714 = smul.u32 %s712, 8
                %s715 = scalar_lea.vmem %s696, %s713 [#allocation2]
                %s716 = scalar_lea.vmem %s698, %s714
              $region68: #{tpu_custom_call.1} parent=55 // loop_footer
                %s702 = sadd.s32 %s700, 1
              $region69: #{tpu_custom_call.1} parent=55 // loop_footer_branch
                %699 = sbr.rel target = $region65
              $region70: #{tpu_custom_call.1} parent=55 // loop_exit
                _
            $region56: #{tpu_custom_call.1} parent=47 // pred_fallthru
              _
          $region48: #{tpu_custom_call.1} parent=43 // pred_fallthru
            _
          %778 = vnop
        $region44: #{tpu_custom_call.1} parent=39 // pred_fallthru
          _
      $region40: #{tpu_custom_call.1} parent=5 // pred_fallthru
        _
      %p779 = scmp.le.s32.totalorder 2, %s11
      // Predicated region
      $region93: #{tpu_custom_call.1} parent=5 // pred_check
        %p780 = pneg %p779
      $region94: #{tpu_custom_call.1} parent=5 // pred_check_branch
        %782 = sbr.rel (%p780) target = $region96
      $region95: #{tpu_custom_call.1} parent=5 // pred_region
        %s783 = ssub.s32 %s11, 2
        // Predicated region
        $region97: #{tpu_custom_call.1} parent=95 // pred_check
          %p784 = pneg %p150
        $region98: #{tpu_custom_call.1} parent=95 // pred_check_branch
          %786 = sbr.rel (%p784) target = $region100
        $region99: #{tpu_custom_call.1} parent=95 // pred_region
          %s787 = sand.u32 %s135, 1
          %s788 = sand.u32 %s135, 1
          %s789 = smul.addr %s788, 56
          %s790 = scalar_lea.vmem [#allocation2], %s789
        $region100: #{tpu_custom_call.1} parent=95 // pred_fallthru
          _
      $region96: #{tpu_custom_call.1} parent=5 // pred_fallthru
        _
    $region6: #{tpu_custom_call.1} parent=1 // loop_footer
      %s15 = sadd.s32 1, %s11
    $region7: #{tpu_custom_call.1} parent=1 // loop_footer_branch
      %10 = sbr.rel target = $region3
    $region8: #{tpu_custom_call.1} parent=1 // loop_exit
      _

</llo_original>
